<compile_context>
chip_gen: v7x
topology: tpu7x:2x2x1
jax: 0.10.0
libtpu: 0.0.40
codegen_flags: <defaults>
</compile_context>

<pallas_src>
import functools

import jax
import jax.numpy as jnp
from jax.experimental import pallas as pl
from jax.experimental.pallas import tpu as pltpu


def _round_up(x: int, m: int) -> int:
    return ((x + m - 1) // m) * m


def _pick_tile(dim: int, align: int, max_tile: int, prefer: int | None = None):
    """Tile size (multiple of `align`, <= max_tile) minimizing padding of `dim`.

    Ties are broken by preferring multiples of `prefer`, then the largest tile.
    Since `align` always divides the (align-rounded) dim, the minimum-padding
    choice is always an exact divisor -> no extra padding is ever introduced.
    """
    dim = _round_up(dim, align)
    max_tile = max(align, (max_tile // align) * align)
    best_key, best_t = None, align
    t = align
    while t <= max_tile:
        padded = _round_up(dim, t)
        key = (padded, 0 if (prefer is not None and t % prefer == 0) else 1, -t)
        if best_key is None or key < best_key:
            best_key, best_t = key, t
        t += align
    return best_t, _round_up(dim, best_t)


# ----------------------------------------------------------------------------
# Kernels
# ----------------------------------------------------------------------------
def _linear_kernel_f32out(x_ref, w_ref, b_ref, o_ref):
    # x_ref: [tm, tk]  w_ref: [tk, tn]  b_ref: [1, tn]  o_ref: [tm, tn] (f32)
    # Output block index ignores k -> o_ref stays VMEM-resident across the K
    # reduction, so we accumulate into it directly (no scratch, no final copy).
    k = pl.program_id(2)
    part = jnp.dot(x_ref[...], w_ref[...], preferred_element_type=jnp.float32)

    @pl.when(k == 0)
    def _():
        o_ref[...] = part + b_ref[...]          # fold bias in once

    @pl.when(k > 0)
    def _():
        o_ref[...] += part


def _linear_kernel_acc(x_ref, w_ref, b_ref, o_ref, acc_ref):
    # Narrow output dtype: accumulate in an f32 VMEM scratch, cast once at end.
    k = pl.program_id(2)
    part = jnp.dot(x_ref[...], w_ref[...], preferred_element_type=jnp.float32)

    @pl.when(k == 0)
    def _():
        acc_ref[...] = part                     # write, don't zero-then-add

    @pl.when(k > 0)
    def _():
        acc_ref[...] += part

    @pl.when(k == pl.num_programs(2) - 1)
    def _():
        o_ref[...] = (acc_ref[...] + b_ref[...]).astype(o_ref.dtype)


# ----------------------------------------------------------------------------
# One-time parameter preparation (NOT in the per-call hot path)
# ----------------------------------------------------------------------------
def prepare_mlp1_params(weight, bias, *, compute_dtype=None):
    """Relayout PyTorch-style params once:
      weight [Dout, Din] -> W^T [Din, Dout], zero-padded to 128 multiples
      bias   [Dout]      -> [1, Np] (kept f32 for exact accumulation)
    """
    out_features, in_features = weight.shape
    kp = _round_up(in_features, 128)
    np_ = _round_up(out_features, 128)
    dt = jnp.dtype(compute_dtype) if compute_dtype is not None else weight.dtype
    w_t = jnp.asarray(weight, dt).T
    if w_t.shape != (kp, np_):
        w_t = jnp.pad(w_t, ((0, kp - in_features), (0, np_ - out_features)))
    b = jnp.asarray(bias, jnp.float32).reshape(1, -1)
    if np_ != out_features:
        b = jnp.pad(b, ((0, 0), (0, np_ - out_features)))
    return w_t, b


# ----------------------------------------------------------------------------
# Forward
# ----------------------------------------------------------------------------
@functools.partial(
    jax.jit, static_argnames=("out_features", "tm_max", "tn_max", "tk_max"))
def mlp1_forward(x, w_t, b, *, out_features, tm_max=512, tn_max=512, tk_max=2048):
    """MLP1 forward: flatten(x) @ W^T + b.

    x   : [batch, ...]      (flattened to [batch, Din])
    w_t : [Kp, Np]          prepared by prepare_mlp1_params (Din-major)
    b   : [1, Np]           prepared bias (f32)
    """
    batch = x.shape[0]
    x2 = x.reshape(batch, -1)                               # nn.Flatten()
    in_features = x2.shape[1]
    kp, np_ = w_t.shape
    assert kp == _round_up(in_features, 128), "prepared weight / input mismatch"

    out_dtype = x.dtype

    # ---- tile selection (divisor-seeking, 256-preferring on N/K) -------------
    tm, mp = _pick_tile(batch, 8, tm_max)
    tn, _ = _pick_tile(np_, 128, tn_max, prefer=256)
    tk, _ = _pick_tile(kp, 128, tk_max, prefer=256)

    # v7x megacore: guarantee >= 2 blocks across the "parallel" axes when possible.
    if mp // tm == 1 and np_ // tn == 1:
        if np_ >= 256:
            tn, _ = _pick_tile(np_, 128, np_ // 2, prefer=256)
        elif mp >= 16:
            tm, _ = _pick_tile(mp, 8, mp // 2)

    grid = (mp // tm, np_ // tn, kp // tk)                  # K last: acc-resident

    # ---- per-call x prep: dtype match + pad only when ragged -----------------
    if x2.dtype != w_t.dtype:
        x2 = x2.astype(w_t.dtype)                           # bf16 operands option
    if x2.shape != (mp, kp):
        x2 = jnp.pad(x2, ((0, mp - batch), (0, kp - in_features)))

    # ---- cost estimate (incl. W re-read per M block, x re-read per N block) --
    in_bytes = jnp.dtype(w_t.dtype).itemsize
    out_bytes = jnp.dtype(out_dtype).itemsize
    cost = pl.CostEstimate(
        flops=2 * mp * np_ * kp,
        transcendentals=0,
        bytes_accessed=(grid[1] * mp * kp * in_bytes
                        + grid[0] * np_ * kp * in_bytes
                        + np_ * 4
                        + mp * np_ * out_bytes),
    )

    # ---- explicit scoped-VMEM budget (covers v5e 16 MiB default; < v7x 64 MiB)
    use_acc = out_dtype != jnp.float32
    vmem_need = (2 * (tm * tk + tk * tn) * in_bytes        # double-buffered x, W
                 + 2 * tm * tn * out_bytes                 # double-buffered out
                 + 2 * tn * 4                              # bias
                 + (tm * tn * 4 if use_acc else 0))        # f32 accumulator
    vmem_limit = int(min(48 << 20, max(32 << 20, int(vmem_need * 1.5))))

    kernel = _linear_kernel_acc if use_acc else _linear_kernel_f32out
    scratch = [pltpu.VMEM((tm, tn), jnp.float32)] if use_acc else []

    out_padded = pl.pallas_call(
        kernel,
        out_shape=jax.ShapeDtypeStruct((mp, np_), out_dtype),
        grid_spec=pltpu.PrefetchScalarGridSpec(
            num_scalar_prefetch=0,
            grid=grid,
            in_specs=[
                pl.BlockSpec((tm, tk), lambda i, j, k: (i, k)),   # x  [M, K]
                pl.BlockSpec((tk, tn), lambda i, j, k: (k, j)),   # Wt [K, N]
                pl.BlockSpec((1, tn), lambda i, j, k: (0, j)),    # bias [1, N]
            ],
            out_specs=pl.BlockSpec((tm, tn), lambda i, j, k: (i, j)),
            scratch_shapes=scratch,
        ),
        compiler_params=pltpu.CompilerParams(
            dimension_semantics=("parallel", "parallel", "arbitrary"),
            vmem_limit_bytes=vmem_limit,
        ),
        cost_estimate=cost,
    )(x2, w_t, b)

    return out_padded[:batch, :out_features]


if __name__ == "__main__":
    # MLP1 demo: x [batch, C, H, W] -> Flatten -> Linear(C*H*W, output_dim).
    batch, C, H, W = 2, 4, 8, 8
    input_dim = C * H * W                      # 256
    output_dim = 32

    key = jax.random.PRNGKey(0)
    kx, kw, kb = jax.random.split(key, 3)

    # nn.Linear default init: uniform(-1/sqrt(in), 1/sqrt(in))
    bound = 1.0 / (input_dim ** 0.5)
    weight = jax.random.uniform(
        kw, (output_dim, input_dim), jnp.float32, -bound, bound)
    bias = jax.random.uniform(kb, (output_dim,), jnp.float32, -bound, bound)
    x = jax.random.normal(kx, (batch, C, H, W), jnp.float32)

    # One-time relayout/padding of the parameters (outside the hot path).
    w_t, b_p = prepare_mlp1_params(weight, bias)
    w_t, b_p = jax.block_until_ready((w_t, b_p))

    y = mlp1_forward(x, w_t, b_p, out_features=output_dim)
    y = jax.block_until_ready(y)

    # Pure-JAX reference.
    y_ref = x.reshape(batch, -1) @ weight.T + bias
    assert y.shape == (batch, output_dim)
    assert jnp.allclose(y, y_ref, atol=1e-5, rtol=1e-5), (
        float(jnp.max(jnp.abs(y - y_ref))))

    print("KERNEL_OK")
</pallas_src>

<mosaic_0001>
module attributes {stable_mosaic.version = 11 : i64} {
  func.func @_linear_kernel_f32out(%arg0: i32, %arg1: i32, %arg2: i32, %arg3: memref<8x256xf32, #tpu.memory_space<vmem>>, %arg4: memref<256x128xf32, #tpu.memory_space<vmem>>, %arg5: memref<1x128xf32, #tpu.memory_space<vmem>>, %arg6: memref<8x128xf32, #tpu.memory_space<vmem>>) attributes {dimension_semantics = [#tpu.dimension_semantics<parallel>, #tpu.dimension_semantics<parallel>, #tpu.dimension_semantics<arbitrary>], iteration_bounds = array<i64: 1, 1, 1>, scalar_prefetch = 0 : i64, scratch_operands = 0 : i64, tpu.core_type = #tpu.core_type<tc>, window_params = [{transform_indices = @transform_0, window_bounds = array<i64: 8, 256>}, {transform_indices = @transform_1, window_bounds = array<i64: 256, 128>}, {transform_indices = @transform_2, window_bounds = array<i64: 1, 128>}, {transform_indices = @transform_3, window_bounds = array<i64: 8, 128>}]} {
    %c0 = arith.constant 0 : index
    %c0_0 = arith.constant 0 : index
    %0 = vector.load %arg3[%c0, %c0_0] : memref<8x256xf32, #tpu.memory_space<vmem>>, vector<8x256xf32>
    %c0_1 = arith.constant 0 : index
    %c0_2 = arith.constant 0 : index
    %1 = vector.load %arg4[%c0_1, %c0_2] : memref<256x128xf32, #tpu.memory_space<vmem>>, vector<256x128xf32>
    %cst = arith.constant dense<0.000000e+00> : vector<8x128xf32>
    %2 = tpu.matmul %0, %1, %cst {dimension_numbers = #tpu.dot_dimension_numbers<[1], [0], [0], [1], [0, 0, 1, 1], [], []>} : vector<8x256xf32>, vector<256x128xf32>, vector<8x128xf32> -> vector<8x128xf32>
    %c0_i32 = arith.constant 0 : i32
    %3 = arith.cmpi eq, %arg2, %c0_i32 : i32
    %4 = arith.extui %3 : i1 to i32
    %c0_i32_3 = arith.constant 0 : i32
    %5 = arith.cmpi ne, %4, %c0_i32_3 : i32
    scf.if %5 {
      %c0_6 = arith.constant 0 : index
      %c0_7 = arith.constant 0 : index
      %9 = vector.load %arg5[%c0_6, %c0_7] : memref<1x128xf32, #tpu.memory_space<vmem>>, vector<1x128xf32>
      %10 = vector.broadcast %9 : vector<1x128xf32> to vector<8x128xf32>
      %11 = arith.addf %2, %10 : vector<8x128xf32>
      %c0_8 = arith.constant 0 : index
      %c0_9 = arith.constant 0 : index
      %12 = vector.load %arg6[%c0_8, %c0_9] : memref<8x128xf32, #tpu.memory_space<vmem>>, vector<8x128xf32>
      tpu.vector_store %arg6[%c0_8, %c0_9], %11 {strides = array<i32>} : memref<8x128xf32, #tpu.memory_space<vmem>>, vector<8x128xf32>,
    } else {
    }
    %c0_i32_4 = arith.constant 0 : i32
    %6 = arith.cmpi sgt, %arg2, %c0_i32_4 : i32
    %7 = arith.extui %6 : i1 to i32
    %c0_i32_5 = arith.constant 0 : i32
    %8 = arith.cmpi ne, %7, %c0_i32_5 : i32
    scf.if %8 {
      %c0_6 = arith.constant 0 : index
      %c0_7 = arith.constant 0 : index
      %9 = vector.load %arg6[%c0_6, %c0_7] : memref<8x128xf32, #tpu.memory_space<vmem>>, vector<8x128xf32>
      %10 = arith.addf %9, %2 : vector<8x128xf32>
      %c0_8 = arith.constant 0 : index
      %c0_9 = arith.constant 0 : index
      %11 = vector.load %arg6[%c0_8, %c0_9] : memref<8x128xf32, #tpu.memory_space<vmem>>, vector<8x128xf32>
      tpu.vector_store %arg6[%c0_8, %c0_9], %10 {strides = array<i32>} : memref<8x128xf32, #tpu.memory_space<vmem>>, vector<8x128xf32>,
    } else {
    }
    return
  }
  func.func @transform_0(%arg0: i32, %arg1: i32, %arg2: i32) -> (i32, i32) {
    %c0_i32 = arith.constant 0 : i32
    return %arg0, %arg2 : i32, i32
  }
  func.func @transform_1(%arg0: i32, %arg1: i32, %arg2: i32) -> (i32, i32) {
    %c0_i32 = arith.constant 0 : i32
    return %arg2, %arg1 : i32, i32
  }
  func.func @transform_2(%arg0: i32, %arg1: i32, %arg2: i32) -> (i32, i32) {
    %c0_i32 = arith.constant 0 : i32
    %c0_i32_0 = arith.constant 0 : i32
    return %c0_i32, %arg1 : i32, i32
  }
  func.func @transform_3(%arg0: i32, %arg1: i32, %arg2: i32) -> (i32, i32) {
    %c0_i32 = arith.constant 0 : i32
    return %arg0, %arg1 : i32, i32
  }
}

</mosaic_0001>

<llo_original>
// kernel: mlp1_forward.1
$region0: #{mlp1_forward.1}
  #allocation0 [shape = 'u32[]', space=smem, size = 0x4, offset = 0x4, fixed_abs, tag = 'smem constant byte address 0x4 - core index']
  #allocation1 [shape = 'u32[144,128]{1,0:T(1,128)}', space=vmem, size = 0x12000, scoped, tag = 'internal scratch']
  %s0 = inlined_call_operand.vmem [shape: f32[8,256], index: 0, kind: input, shape index: {}]
  %s1 = inlined_call_operand.hbm [shape: f32[256,128], index: 1, kind: input, shape index: {}]
  %s2 = inlined_call_operand.vmem [shape: f32[1,128], index: 2, kind: input, shape index: {}]
  %s3 = inlined_call_operand.vmem [shape: f32[8,128], index: 3, kind: output, shape index: {}]
  %s4 = sld [smem:[#allocation0]]
  $region34: #{mlp1_forward.1} parent=0
    _
  %s6 = ssub.s32 1, %s4
  %s7 = scalar_select 0, %s6, %s4
  $region1: #{mlp1_forward.1} parent=0
    #allocation2 [shape = 'u8[131072]{0}', space=vmem, size = 0x20000, scoped, tag = 'input window, operand 1, single buffered']
    #allocation3 [shape = 's32[1]{0}', space=sflag, size = 0x4, scoped, tag = 'scoped memory for mlp1_forward.1']
    %8 = vsyncpa [#allocation3], 0
    // Predicated region
    $region2: #{mlp1_forward.1} parent=1 // pred_check
      _
    $region3: #{mlp1_forward.1} parent=1 // pred_check_branch
      %10 = sbr.rel (0) target = $region5
    $region4: #{mlp1_forward.1} parent=1 // pred_region
      _
    $region5: #{mlp1_forward.1} parent=1 // pred_fallthru
      _
    // Predicated region
    $region6: #{mlp1_forward.1} parent=1 // pred_check
      _
    $region7: #{mlp1_forward.1} parent=1 // pred_check_branch
      %12 = sbr.rel (0) target = $region9
    $region8: #{mlp1_forward.1} parent=1 // pred_region
      %s14 = ssub.s32 4096, 4096
      %15 = vsyncadd [#allocation3], %s14
      %s16 = sshll.u32 [#allocation2], 4
      %s17 = int_to_ptr.vmem [resolvable:$true] %s16
      %22 = dma.hbm_to_vmem [thread:$0]  %s1, 4096, %s17, [#allocation3], 128, 128, 8
    $region9: #{mlp1_forward.1} parent=1 // pred_fallthru
      _
    // Predicated region
    $region10: #{mlp1_forward.1} parent=1 // pred_check
      _
    $region11: #{mlp1_forward.1} parent=1 // pred_check_branch
      %24 = sbr.rel (0) target = $region13
    $region12: #{mlp1_forward.1} parent=1 // pred_region
      _
    $region13: #{mlp1_forward.1} parent=1 // pred_fallthru
      _
    // Predicated region
    $region14: #{mlp1_forward.1} parent=1 // pred_check
      _
    $region15: #{mlp1_forward.1} parent=1 // pred_check_branch
      %26 = sbr.rel (0) target = $region17
    $region16: #{mlp1_forward.1} parent=1 // pred_region
      %27 = dma.done [#allocation3], 4096
    $region17: #{mlp1_forward.1} parent=1 // pred_fallthru
      _
    %v28 = vld [vmem:[%s0] sm:$0xff]
    %v29 = vld [vmem:[%s0 + $0x8] sm:$0xff]
    %v30 = vld [vmem:[#allocation2] sm:$0xff]
    %v31 = vld [vmem:[#allocation2 + $0x8] sm:$0xff]
    %v32 = vld [vmem:[#allocation2 + $0x10] sm:$0xff]
    %v33 = vld [vmem:[#allocation2 + $0x18] sm:$0xff]
    %v34 = vld [vmem:[#allocation2 + $0x20] sm:$0xff]
    %v35 = vld [vmem:[#allocation2 + $0x28] sm:$0xff]
    %v36 = vld [vmem:[#allocation2 + $0x30] sm:$0xff]
    %v37 = vld [vmem:[#allocation2 + $0x38] sm:$0xff]
    %v38 = vld [vmem:[#allocation2 + $0x40] sm:$0xff]
    %v39 = vld [vmem:[#allocation2 + $0x48] sm:$0xff]
    %v40 = vld [vmem:[#allocation2 + $0x50] sm:$0xff]
    %v41 = vld [vmem:[#allocation2 + $0x58] sm:$0xff]
    %v42 = vld [vmem:[#allocation2 + $0x60] sm:$0xff]
    %v43 = vld [vmem:[#allocation2 + $0x68] sm:$0xff]
    %v44 = vld [vmem:[#allocation2 + $0x70] sm:$0xff]
    %v45 = vld [vmem:[#allocation2 + $0x78] sm:$0xff]
    %v46 = vld [vmem:[#allocation2 + $0x80] sm:$0xff]
    %v47 = vld [vmem:[#allocation2 + $0x88] sm:$0xff]
    %v48 = vld [vmem:[#allocation2 + $0x90] sm:$0xff]
    %v49 = vld [vmem:[#allocation2 + $0x98] sm:$0xff]
    %v50 = vld [vmem:[#allocation2 + $0xa0] sm:$0xff]
    %v51 = vld [vmem:[#allocation2 + $0xa8] sm:$0xff]
    %v52 = vld [vmem:[#allocation2 + $0xb0] sm:$0xff]
    %v53 = vld [vmem:[#allocation2 + $0xb8] sm:$0xff]
    %v54 = vld [vmem:[#allocation2 + $0xc0] sm:$0xff]
    %v55 = vld [vmem:[#allocation2 + $0xc8] sm:$0xff]
    %v56 = vld [vmem:[#allocation2 + $0xd0] sm:$0xff]
    %v57 = vld [vmem:[#allocation2 + $0xd8] sm:$0xff]
    %v58 = vld [vmem:[#allocation2 + $0xe0] sm:$0xff]
    %v59 = vld [vmem:[#allocation2 + $0xe8] sm:$0xff]
    %v60 = vld [vmem:[#allocation2 + $0xf0] sm:$0xff]
    %v61 = vld [vmem:[#allocation2 + $0xf8] sm:$0xff]
    %62 = vmatprep.subr.mxu0 0.0
    %63 = vmatpush1.msra.mxu0 %v30
    %64 = vmatprep.subr.mxu0 0.0
    %65 = vmatpush1.msra.mxu0 %v31
    %66 = vmatprep.subr.mxu0 0.0
    %67 = vmatpush1.msra.mxu0 %v32
    %68 = vmatprep.subr.mxu0 0.0
    %69 = vmatpush1.msra.mxu0 %v33
    %70 = vmatprep.subr.mxu0 0.0
    %71 = vmatpush1.msra.mxu0 %v34
    %72 = vmatprep.subr.mxu0 0.0
    %73 = vmatpush1.msra.mxu0 %v35
    %74 = vmatprep.subr.mxu0 0.0
    %75 = vmatpush1.msra.mxu0 %v36
    %76 = vmatprep.subr.mxu0 0.0
    %77 = vmatpush1.msra.mxu0 %v37
    %78 = vmatprep.subr.mxu0 0.0
    %79 = vmatpush1.msra.mxu0 %v38
    %80 = vmatprep.subr.mxu0 0.0
    %81 = vmatpush1.msra.mxu0 %v39
    %82 = vmatprep.subr.mxu0 0.0
    %83 = vmatpush1.msra.mxu0 %v40
    %84 = vmatprep.subr.mxu0 0.0
    %85 = vmatpush1.msra.mxu0 %v41
    %86 = vmatprep.subr.mxu0 0.0
    %87 = vmatpush1.msra.mxu0 %v42
    %88 = vmatprep.subr.mxu0 0.0
    %89 = vmatpush1.msra.mxu0 %v43
    %90 = vmatprep.subr.mxu0 0.0
    %91 = vmatpush1.msra.mxu0 %v44
    %92 = vmatprep.subr.mxu0 0.0
    %93 = vmatpush1.msra.mxu0 %v45
    %94 = vmatprep.subr.mxu0 0.0
    %95 = vmatpush1.msra.mxu0 %v46
    %96 = vmatprep.subr.mxu0 0.0
    %97 = vmatpush1.msra.mxu0 %v47
    %98 = vmatprep.subr.mxu0 0.0
    %99 = vmatpush1.msra.mxu0 %v48
    %100 = vmatprep.subr.mxu0 0.0
    %101 = vmatpush1.msra.mxu0 %v49
    %102 = vmatprep.subr.mxu0 0.0
    %103 = vmatpush1.msra.mxu0 %v50
    %104 = vmatprep.subr.mxu0 0.0
    %105 = vmatpush1.msra.mxu0 %v51
    %106 = vmatprep.subr.mxu0 0.0
    %107 = vmatpush1.msra.mxu0 %v52
    %108 = vmatprep.subr.mxu0 0.0
    %109 = vmatpush1.msra.mxu0 %v53
    %110 = vmatprep.subr.mxu0 0.0
    %111 = vmatpush1.msra.mxu0 %v54
    %112 = vmatprep.subr.mxu0 0.0
    %113 = vmatpush1.msra.mxu0 %v55
    %114 = vmatprep.subr.mxu0 0.0
    %115 = vmatpush1.msra.mxu0 %v56
    %116 = vmatprep.subr.mxu0 0.0
    %117 = vmatpush1.msra.mxu0 %v57
    %118 = vmatprep.subr.mxu0 0.0
    %119 = vmatpush1.msra.mxu0 %v58
    %120 = vmatprep.subr.mxu0 0.0
    %121 = vmatpush1.msra.mxu0 %v59
    %122 = vmatprep.subr.mxu0 0.0
    %123 = vmatpush1.msra.mxu0 %v60
    %124 = vmatprep.subr.mxu0 0.0
    %125 = vmatpush1.msra.mxu0 %v61
    %126 = vmatprep.mubr.f32.mxu0 %v29
    %127 = vmatmul.mubr.f32.gmra.mrb[0].mxu0 %v28
    %v128 = vpop.f32.mrb[0].mxu0
    %v129 = vadd.f32 0.0, %v128
    %v130 = vpop.f32.mrb[0].mxu0
    %131 = vdwg.mxu0
    %p132 = scmp.eq.s32.totalorder 0, 0
    // Predicated region
    $region18: #{mlp1_forward.1} parent=1 // pred_check
      %p133 = pneg %p132
    $region19: #{mlp1_forward.1} parent=1 // pred_check_branch
      %135 = sbr.rel (%p133) target = $region21
    $region20: #{mlp1_forward.1} parent=1 // pred_region
      %v136 = vld [vmem:[%s2] sm:$0x1]
      %v138 = vlaneseq
      %v139 = vshrl.u32 %v138, 7
      %v140 = vsub.s32 0, %v139
      %v141 = vrot.slane %v136, %v140
      %v143 = vadd.f32 %v129, %v141
      %144 = vst [vmem:[%s3] sm:$0xff] %v143
    $region21: #{mlp1_forward.1} parent=1 // pred_fallthru
      _
    %p145 = scmp.gt.s32.totalorder 0, 0
    // Predicated region
    $region22: #{mlp1_forward.1} parent=1 // pred_check
      %p146 = pneg %p145
    $region23: #{mlp1_forward.1} parent=1 // pred_check_branch
      %148 = sbr.rel (%p146) target = $region25
    $region24: #{mlp1_forward.1} parent=1 // pred_region
      %v149 = vld [vmem:[%s3] sm:$0xff]
      %v150 = vadd.f32 %v149, %v129
      %151 = vst [vmem:[%s3] sm:$0xff] %v150
    $region25: #{mlp1_forward.1} parent=1 // pred_fallthru
      _
    // Predicated region
    $region26: #{mlp1_forward.1} parent=1 // pred_check
      _
    $region27: #{mlp1_forward.1} parent=1 // pred_check_branch
      %153 = sbr.rel (0) target = $region29
    $region28: #{mlp1_forward.1} parent=1 // pred_region
      _
    $region29: #{mlp1_forward.1} parent=1 // pred_fallthru
      _
    // Predicated region
    $region30: #{mlp1_forward.1} parent=1 // pred_check
      _
    $region31: #{mlp1_forward.1} parent=1 // pred_check_branch
      %155 = sbr.rel (0) target = $region33
    $region32: #{mlp1_forward.1} parent=1 // pred_region
      _
    $region33: #{mlp1_forward.1} parent=1 // pred_fallthru
      _
    %156 = vsyncpa [#allocation3], 1

</llo_original>
